<compile_context>
chip_gen: v7x
topology: tpu7x:2x2x1
jax: 0.10.0
libtpu: 0.0.40
codegen_flags: <defaults>
</compile_context>

<pallas_src>
import functools
import math

import jax
import jax.numpy as jnp
import numpy as np
from jax import lax
from jax.experimental import pallas as pl
from jax.experimental.pallas import tpu as pltpu


def _sbb_kernel(d_ref, e_ref, ft_ref, o_ref, *, norm_const, m_valid):
    # d_ref : (tm, G)    distances, G per 128-lane group
    # e_ref : (G, 128)   0/1 lane-expansion matrix, E[k, b] = (b // R_pad == k)
    # ft_ref: (1, 128)   frequencies tiled along lanes, ft[b] = freq[b % R_pad]
    # o_ref : (tm, 128)  lane-dense output slab tile
    i = pl.program_id(0)
    tm = d_ref.shape[0]
    d = d_ref[...]                                            # (tm, G)

    # Guard the grid-boundary block: rows >= m_valid may hold garbage; keep
    # them finite so no inf/NaN is ever produced (they are write-masked anyway).
    row = i * tm + lax.broadcasted_iota(jnp.int32, d.shape, 0)
    d = jnp.where(row < m_valid, d, 1.0)

    # Replicate each distance R_pad times along the lane axis via the idle MXU.
    # HIGHEST precision => exact f32 replication (0/1 weights).
    d_exp = jnp.dot(d, e_ref[...],
                    precision=lax.Precision.HIGHEST,
                    preferred_element_type=jnp.float32)       # (tm, 128)

    arg = ft_ref[...] * d_exp                                 # freq[j] * d[i]
    # Exact f32 divide (the approx EUP reciprocal was not accurate enough).
    o_ref[...] = ((norm_const / d_exp) * jnp.sin(arg)).astype(o_ref.dtype)


def _round_up(x, m):
    return pl.cdiv(x, m) * m


def spherical_bessel_basis(d_scaled, frequencies, norm_const, *, tm=4096,
                           out_dtype=None):
    """Pallas forward of SphericalBesselBasis.

    d_scaled: (N,), frequencies: (num_radial,).
    Returns (N, num_radial) in `out_dtype` (default: d_scaled.dtype).
    """
    N = d_scaled.shape[0]
    R = frequencies.shape[0]
    out_dtype = out_dtype if out_dtype is not None else d_scaled.dtype

    # Pad num_radial up to a power of two so it divides the 128-lane width.
    R_pad = max(1, int(pl.next_power_of_2(R)))
    if R_pad > 128:
        # TODO(synk): num_radial > 128 would want a plain (N, R)-tiled kernel
        # (R already lane-dense); not implemented here.
        raise NotImplementedError("num_radial > 128 not supported")
    G = 128 // R_pad                      # distances per 128-lane group
    M = pl.cdiv(N, G)                     # rows of the (M, 128) output slab
    n_pad = M * G

    d32 = d_scaled.astype(jnp.float32)
    if n_pad != N:                        # tiny tail pad only in the ragged case
        d32 = jnp.pad(d32, (0, n_pad - N), constant_values=1.0)
    d2 = d32.reshape(M, G)                # order-preserving reshape

    f32 = frequencies.astype(jnp.float32)
    if R_pad != R:
        f32 = jnp.pad(f32, (0, R_pad - R))            # zero freq -> zero output col
    ft = jnp.tile(f32, G).reshape(1, 128)             # ft[b] = freq[b % R_pad]

    # Lane-expansion matrix: E[k, b] = 1.0 iff b // R_pad == k.
    expand = (jnp.arange(128, dtype=jnp.int32) // R_pad
              == jnp.arange(G, dtype=jnp.int32)[:, None]).astype(jnp.float32)

    # Tile rows: big enough to amortize per-step overhead, small enough for
    # VMEM (double-buffered d + out ≈ 2 * 2 * tm * 128 * 4 B), and capped at
    # ceil(M/2) so >= 2 grid steps exist for the two v7x TensorCores.
    tm_eff = min(int(tm), max(8, int(_round_up(pl.cdiv(M, 2), 8))))
    grid = (pl.cdiv(M, tm_eff),)

    n_out = M * 128
    cost = pl.CostEstimate(
        flops=8 * n_out,                         # muls/div + tiny expand matmul
        transcendentals=n_out,                   # one sin per output element
        bytes_accessed=4 * (M * G + G * 128 + 128)
        + n_out * jnp.dtype(out_dtype).itemsize,
    )

    kernel = functools.partial(_sbb_kernel, norm_const=float(norm_const),
                               m_valid=M)

    out_slab = pl.pallas_call(
        kernel,
        out_shape=jax.ShapeDtypeStruct((M, 128), out_dtype),
        grid=grid,
        in_specs=[
            pl.BlockSpec((tm_eff, G), lambda i: (i, 0)),   # distances
            pl.BlockSpec((G, 128), lambda i: (0, 0)),      # expand matrix (resident)
            pl.BlockSpec((1, 128), lambda i: (0, 0)),      # tiled frequencies (resident)
        ],
        out_specs=pl.BlockSpec((tm_eff, 128), lambda i: (i, 0)),
        compiler_params=pltpu.CompilerParams(
            dimension_semantics=("parallel",),             # megacore-shardable
        ),
        cost_estimate=cost,
    )(d2, expand, ft)

    # Row-major flatten of (M, 128) is exactly the (n_pad, R_pad) row-major
    # order -> order-preserving reshape, no transpose pass.
    out = out_slab.reshape(n_pad, R_pad)
    if n_pad != N:
        out = out[:N]
    if R_pad != R:
        out = out[:, :R]
    return out


if __name__ == "__main__":
    num_radial = 8
    cutoff = 6.0
    N = 256  # number of edges / distances (small demo size)

    # Deterministic parameter init (matches torch __init__):
    norm_const = math.sqrt(2.0 / cutoff ** 3)
    frequencies = jnp.asarray(
        np.pi * np.arange(1, num_radial + 1, dtype=np.float32)
    )

    # Deterministic example input; keep d > 0 to avoid the same d == 0
    # singularity the torch reference has.
    key = jax.random.PRNGKey(0)
    d_scaled = jax.random.uniform(
        key, (N,), dtype=jnp.float32, minval=0.1, maxval=1.0
    )

    out = spherical_bessel_basis(d_scaled, frequencies, norm_const)
    out = jax.block_until_ready(out)

    # Reference check in plain JAX (exact divide in-kernel, so tight tolerance).
    ref = norm_const / d_scaled[:, None] * jnp.sin(frequencies * d_scaled[:, None])
    assert out.shape == (N, num_radial)
    np.testing.assert_allclose(np.asarray(out), np.asarray(ref),
                               rtol=1e-5, atol=1e-6)

    print("KERNEL_OK")
</pallas_src>

<mosaic_0001>
module attributes {stable_mosaic.version = 11 : i64} {
  func.func @_sbb_kernel(%arg0: i32, %arg1: memref<8x16xf32, #tpu.memory_space<vmem>>, %arg2: memref<16x128xf32, #tpu.memory_space<vmem>>, %arg3: memref<1x128xf32, #tpu.memory_space<vmem>>, %arg4: memref<8x128xf32, #tpu.memory_space<vmem>>) attributes {dimension_semantics = [#tpu.dimension_semantics<parallel>], iteration_bounds = array<i64: 2>, scalar_prefetch = 0 : i64, scratch_operands = 0 : i64, tpu.core_type = #tpu.core_type<tc>, window_params = [{transform_indices = @transform_0, window_bounds = array<i64: 8, 16>}, {pipeline_mode = #tpu.pipeline_mode<synchronous>, transform_indices = @transform_1, window_bounds = array<i64: 16, 128>}, {pipeline_mode = #tpu.pipeline_mode<synchronous>, transform_indices = @transform_2, window_bounds = array<i64: 1, 128>}, {transform_indices = @transform_3, window_bounds = array<i64: 8, 128>}]} {
    %c0 = arith.constant 0 : index
    %c0_0 = arith.constant 0 : index
    %0 = vector.load %arg1[%c0, %c0_0] : memref<8x16xf32, #tpu.memory_space<vmem>>, vector<8x16xf32>
    %c8_i32 = arith.constant 8 : i32
    %1 = arith.muli %arg0, %c8_i32 : i32
    %2 = tpu.iota {dimensions = array<i32: 0>} : vector<8x16xi32>
    %3 = vector.broadcast %1 : i32 to vector<8x16xi32>
    %4 = arith.addi %3, %2 : vector<8x16xi32>
    %c16_i32 = arith.constant 16 : i32
    %5 = vector.broadcast %c16_i32 : i32 to vector<8x16xi32>
    %6 = arith.cmpi slt, %4, %5 : vector<8x16xi32>
    %cst = arith.constant 1.000000e+00 : f32
    %7 = vector.broadcast %cst : f32 to vector<8x16xf32>
    %8 = arith.select %6, %0, %7 : vector<8x16xi1>, vector<8x16xf32>
    %c0_1 = arith.constant 0 : index
    %c0_2 = arith.constant 0 : index
    %9 = vector.load %arg2[%c0_1, %c0_2] : memref<16x128xf32, #tpu.memory_space<vmem>>, vector<16x128xf32>
    %cst_3 = arith.constant dense<0.000000e+00> : vector<8x128xf32>
    %10 = tpu.matmul %8, %9, %cst_3 {dimension_numbers = #tpu.dot_dimension_numbers<[1], [0], [0], [1], [0, 0, 1, 1], [], []>, precision = #tpu.contract_precision<fp32>} : vector<8x16xf32>, vector<16x128xf32>, vector<8x128xf32> -> vector<8x128xf32>
    %c0_4 = arith.constant 0 : index
    %c0_5 = arith.constant 0 : index
    %11 = vector.load %arg3[%c0_4, %c0_5] : memref<1x128xf32, #tpu.memory_space<vmem>>, vector<1x128xf32>
    %12 = vector.broadcast %11 : vector<1x128xf32> to vector<8x128xf32>
    %13 = arith.mulf %12, %10 : vector<8x128xf32>
    %cst_6 = arith.constant 0.0962250456 : f32
    %14 = vector.broadcast %cst_6 : f32 to vector<8x128xf32>
    %15 = arith.divf %14, %10 : vector<8x128xf32>
    %16 = math.sin %13 : vector<8x128xf32>
    %17 = arith.mulf %15, %16 : vector<8x128xf32>
    %c0_7 = arith.constant 0 : index
    %c0_8 = arith.constant 0 : index
    %18 = vector.load %arg4[%c0_7, %c0_8] : memref<8x128xf32, #tpu.memory_space<vmem>>, vector<8x128xf32>
    tpu.vector_store %arg4[%c0_7, %c0_8], %17 {strides = array<i32>} : memref<8x128xf32, #tpu.memory_space<vmem>>, vector<8x128xf32>,
    return
  }
  func.func @transform_0(%arg0: i32) -> (i32, i32) {
    %c0_i32 = arith.constant 0 : i32
    %c0_i32_0 = arith.constant 0 : i32
    return %arg0, %c0_i32 : i32, i32
  }
  func.func @transform_1(%arg0: i32) -> (i32, i32) {
    %c0_i32 = arith.constant 0 : i32
    %c0_i32_0 = arith.constant 0 : i32
    %c0_i32_1 = arith.constant 0 : i32
    return %c0_i32, %c0_i32_0 : i32, i32
  }
  func.func @transform_2(%arg0: i32) -> (i32, i32) {
    %c0_i32 = arith.constant 0 : i32
    %c0_i32_0 = arith.constant 0 : i32
    %c0_i32_1 = arith.constant 0 : i32
    return %c0_i32, %c0_i32_0 : i32, i32
  }
  func.func @transform_3(%arg0: i32) -> (i32, i32) {
    %c0_i32 = arith.constant 0 : i32
    %c0_i32_0 = arith.constant 0 : i32
    return %arg0, %c0_i32 : i32, i32
  }
}

</mosaic_0001>

<llo_original>
// kernel: tpu_custom_call.1
$region0: #{tpu_custom_call.1}
  #allocation0 [shape = 'u32[]', space=smem, size = 0x4, offset = 0x4, fixed_abs, tag = 'smem constant byte address 0x4 - core index']
  #allocation1 [shape = 'u32[144,128]{1,0:T(1,128)}', space=vmem, size = 0x12000, scoped, tag = 'internal scratch']
  %s0 = inlined_call_operand.hbm [shape: f32[16,16], index: 0, kind: input, shape index: {}]
  %s1 = inlined_call_operand.hbm [shape: f32[16,128], index: 1, kind: input, shape index: {}]
  %s2 = inlined_call_operand.vmem [shape: f32[1,128], index: 2, kind: input, shape index: {}]
  %s3 = inlined_call_operand.hbm [shape: f32[16,128], index: 3, kind: output, shape index: {}]
  %s4 = sld [smem:[#allocation0]]
  $region53: #{tpu_custom_call.1} parent=0
    _
  %s6 = ssub.s32 1, %s4
  %s7 = scalar_select 0, %s6, %s4
  $region1: #{tpu_custom_call.1} parent=0
    #allocation2 [shape = 'u8[8192]{0}', space=vmem, size = 0x2000, scoped, tag = 'input window, operand 0']
    #allocation3 [shape = 's32[2]{0}', space=sflag, size = 0x8, scoped, tag = 'scoped memory for tpu_custom_call.1']
    #allocation4 [shape = 's32[2]{0}', space=sflag, size = 0x8, scoped, tag = 'scoped memory for tpu_custom_call.1']
    #allocation5 [shape = 'u8[8192]{0}', space=vmem, size = 0x2000, scoped, tag = 'input window, operand 1, single buffered']
    #allocation6 [shape = 's32[1]{0}', space=sflag, size = 0x4, scoped, tag = 'scoped memory for tpu_custom_call.1']
    #allocation7 [shape = 'u8[8192]{0}', space=vmem, size = 0x2000, scoped, tag = 'output window, operand 0']
    %8 = vsyncpa [#allocation3], 0
    %s9 = scalar_lea.sflag [#allocation3], 1
    %10 = vsyncpa %s9, 0
    %11 = vsyncpa [#allocation6], 0
    %12 = vsyncpa [#allocation4], 0
    %s13 = scalar_lea.sflag [#allocation4], 1
    %14 = vsyncpa %s13, 0
    loop: start=0, step=1, limit=4
    $region2: #{tpu_custom_call.1} parent=1 // loop_pre_header
      _
    $region3: #{tpu_custom_call.1} parent=1 // loop_header
      %s16 = sphi 0, %s20
      %p17 = scmp.ge.s32.totalorder %s16, 4
      %s26 = sphi 0, %s28
      %s29 = sphi 0, %s26
      %s30 = sphi 0, %s29
      %s46 = sphi 0, %s30
      %s50 = sphi 0, %s50
      %s52 = sphi 0, %s50
      %s53 = sphi 0, %s52
      %s67 = sphi 0, %s53
      %s71 = sphi 0, %s71
      %s73 = sphi 0, %s71
      %s74 = sphi 0, %s73
      %s88 = sphi 0, %s74
      %s94 = sphi 0, %s96
      %s97 = sphi 0, %s94
      %s98 = sphi 0, %s97
      %s114 = sphi 0, %s98
    $region4: #{tpu_custom_call.1} parent=1 // loop_header_branch
      %19 = sbr.rel (%p17) target = $region8
    $region5: #{tpu_custom_call.1} parent=1 // loop_body
      %s21 = ssub.s32 %s16, 1
      %s22 = ssub.s32 %s16, 2
      %s23 = sadd.s32 %s16, 1
      %s24 = ssub.s32 %s16, %s23
      %p25 = scmp.eq.s32.totalorder %s24, 0
      %s27 = sadd.s32 %s26, 1
      %s28 = scalar_select %p25, %s26, %s27
      %p31 = pneg %p25
      %p32 = scmp.eq.s32.totalorder %s16, 1
      %p33 = por %p31, %p32
      %p34 = scmp.ne.s32.totalorder %s26, %s29
      %p35 = scmp.eq.s32.totalorder %s16, 0
      %p36 = por %p34, %p35
      %p37 = scmp.ne.s32.totalorder %s26, %s29
      %p38 = scmp.eq.s32.totalorder %s21, 1
      %p39 = por %p37, %p38
      %p40 = scmp.ne.s32.totalorder %s29, %s30
      %p41 = scmp.eq.s32.totalorder %s21, 0
      %p42 = por %p40, %p41
      %p43 = scmp.ne.s32.totalorder %s29, %s30
      %p44 = scmp.eq.s32.totalorder %s22, 1
      %p45 = por %p43, %p44
      %p47 = scmp.ne.s32.totalorder %s30, %s46
      %p48 = scmp.eq.s32.totalorder %s22, 0
      %p49 = por %p47, %p48
      %s51 = sadd.s32 %s50, 1
      %p54 = scmp.eq.s32.totalorder %s16, 1
      %p55 = scmp.ne.s32.totalorder %s50, %s52
      %p56 = scmp.eq.s32.totalorder %s16, 0
      %p57 = por %p55, %p56
      %p58 = scmp.ne.s32.totalorder %s50, %s52
      %p59 = scmp.eq.s32.totalorder %s21, 1
      %p60 = por %p58, %p59
      %p61 = scmp.ne.s32.totalorder %s52, %s53
      %p62 = scmp.eq.s32.totalorder %s21, 0
      %p63 = por %p61, %p62
      %p64 = scmp.ne.s32.totalorder %s52, %s53
      %p65 = scmp.eq.s32.totalorder %s22, 1
      %p66 = por %p64, %p65
      %p68 = scmp.ne.s32.totalorder %s53, %s67
      %p69 = scmp.eq.s32.totalorder %s22, 0
      %p70 = por %p68, %p69
      %s72 = sadd.s32 %s71, 1
      %p75 = scmp.eq.s32.totalorder %s16, 1
      %p76 = scmp.ne.s32.totalorder %s71, %s73
      %p77 = scmp.eq.s32.totalorder %s16, 0
      %p78 = por %p76, %p77
      %p79 = scmp.ne.s32.totalorder %s71, %s73
      %p80 = scmp.eq.s32.totalorder %s21, 1
      %p81 = por %p79, %p80
      %p82 = scmp.ne.s32.totalorder %s73, %s74
      %p83 = scmp.eq.s32.totalorder %s21, 0
      %p84 = por %p82, %p83
      %p85 = scmp.ne.s32.totalorder %s73, %s74
      %p86 = scmp.eq.s32.totalorder %s22, 1
      %p87 = por %p85, %p86
      %p89 = scmp.ne.s32.totalorder %s74, %s88
      %p90 = scmp.eq.s32.totalorder %s22, 0
      %p91 = por %p89, %p90
      %s92 = ssub.s32 %s16, %s23
      %p93 = scmp.eq.s32.totalorder %s92, 0
      %s95 = sadd.s32 %s94, 1
      %s96 = scalar_select %p93, %s94, %s95
      %p99 = pneg %p93
      %p100 = scmp.eq.s32.totalorder %s16, 1
      %p101 = por %p99, %p100
      %p102 = scmp.ne.s32.totalorder %s94, %s97
      %p103 = scmp.eq.s32.totalorder %s16, 0
      %p104 = por %p102, %p103
      %p105 = scmp.ne.s32.totalorder %s94, %s97
      %p106 = scmp.eq.s32.totalorder %s21, 1
      %p107 = por %p105, %p106
      %p108 = scmp.ne.s32.totalorder %s97, %s98
      %p109 = scmp.eq.s32.totalorder %s21, 0
      %p110 = por %p108, %p109
      %p111 = scmp.ne.s32.totalorder %s97, %s98
      %p112 = scmp.eq.s32.totalorder %s22, 1
      %p113 = por %p111, %p112
      %p115 = scmp.ne.s32.totalorder %s98, %s114
      %p116 = scmp.eq.s32.totalorder %s22, 0
      %p117 = por %p115, %p116
      %p118 = scmp.le.s32.totalorder 1, %s16
      %p119 = scmp.lt.s32.totalorder %s16, 3
      %p120 = pnand %p118, %p119
      %p121 = pneg %p120
      // Predicated region
      $region9: #{tpu_custom_call.1} parent=5 // pred_check
        _
      $region10: #{tpu_custom_call.1} parent=5 // pred_check_branch
        %123 = sbr.rel (%p120) target = $region12
      $region11: #{tpu_custom_call.1} parent=5 // pred_region
        %s124 = ssub.s32 %s16, 1
        // Predicated region
        $region13: #{tpu_custom_call.1} parent=11 // pred_check
          %p125 = pneg %p63
        $region14: #{tpu_custom_call.1} parent=11 // pred_check_branch
          %127 = sbr.rel (%p125) target = $region16
        $region15: #{tpu_custom_call.1} parent=11 // pred_region
          %s129 = ssub.s32 256, 256
          %130 = vsyncadd [#allocation6], %s129
          %s131 = sshll.u32 [#allocation5], 4
          %s132 = int_to_ptr.vmem [resolvable:$true] %s131
          %137 = dma.hbm_to_vmem [thread:$0]  %s1, 256, %s132, [#allocation6], 128, 128, 8
        $region16: #{tpu_custom_call.1} parent=11 // pred_fallthru
          _
        // Predicated region
        $region17: #{tpu_custom_call.1} parent=11 // pred_check
          %p138 = pneg %p84
        $region18: #{tpu_custom_call.1} parent=11 // pred_check_branch
          %140 = sbr.rel (%p138) target = $region20
        $region19: #{tpu_custom_call.1} parent=11 // pred_region
          _
        $region20: #{tpu_custom_call.1} parent=11 // pred_fallthru
          _
      $region12: #{tpu_custom_call.1} parent=5 // pred_fallthru
        _
      %p141 = scmp.lt.s32.totalorder %s16, 2
      // Predicated region
      $region21: #{tpu_custom_call.1} parent=5 // pred_check
        %p142 = pneg %p141
      $region22: #{tpu_custom_call.1} parent=5 // pred_check_branch
        %144 = sbr.rel (%p142) target = $region24
      $region23: #{tpu_custom_call.1} parent=5 // pred_region
        // Predicated region
        $region25: #{tpu_custom_call.1} parent=23 // pred_check
          %p145 = pneg %p36
        $region26: #{tpu_custom_call.1} parent=23 // pred_check_branch
          %147 = sbr.rel (%p145) target = $region28
        $region27: #{tpu_custom_call.1} parent=23 // pred_region
          %s148 = sand.u32 %s26, 1
          %s149 = scalar_lea.sflag [#allocation3], %s148
          %s150 = sand.u32 %s26, 1
          %s151 = smul.addr %s150, 8
          %s152 = scalar_lea.vmem [#allocation2], %s151
          %s154 = ssub.s32 128, 128
          %155 = vsyncadd %s149, %s154
          %s156 = smul.addr %s16, 128
          %s157 = scalar_lea.hbm %s0, %s156
          %s159 = sshll.u32 %s152, 4
          %s160 = int_to_ptr.vmem [resolvable:$true] %s159
          %162 = dma.hbm_to_vmem [thread:$0]  %s157, 128, %s160, %s149
        $region28: #{tpu_custom_call.1} parent=23 // pred_fallthru
          _
      $region24: #{tpu_custom_call.1} parent=5 // pred_fallthru
        _
      %p163 = scmp.le.s32.totalorder 1, %s16
      %p164 = scmp.lt.s32.totalorder %s16, 3
      %p165 = pnand %p163, %p164
      %p166 = pneg %p165
      // Predicated region
      $region29: #{tpu_custom_call.1} parent=5 // pred_check
        _
      $region30: #{tpu_custom_call.1} parent=5 // pred_check_branch
        %168 = sbr.rel (%p165) target = $region32
      $region31: #{tpu_custom_call.1} parent=5 // pred_region
        %s169 = ssub.s32 %s16, 1
        %s170 = sand.u32 %s29, 1
        %s171 = scalar_lea.sflag [#allocation3], %s170
        %s172 = sand.u32 %s29, 1
        %s173 = smul.addr %s172, 8
        %s174 = scalar_lea.vmem [#allocation2], %s173
        // Predicated region
        $region33: #{tpu_custom_call.1} parent=31 // pred_check
          %p175 = pneg %p42
        $region34: #{tpu_custom_call.1} parent=31 // pred_check_branch
          %177 = sbr.rel (%p175) target = $region36
        $region35: #{tpu_custom_call.1} parent=31 // pred_region
          %178 = dma.done %s171, 128
        $region36: #{tpu_custom_call.1} parent=31 // pred_fallthru
          _
        // Predicated region
        $region37: #{tpu_custom_call.1} parent=31 // pred_check
          %p179 = pneg %p63
        $region38: #{tpu_custom_call.1} parent=31 // pred_check_branch
          %181 = sbr.rel (%p179) target = $region40
        $region39: #{tpu_custom_call.1} parent=31 // pred_region
          %182 = dma.done [#allocation6], 256
        $region40: #{tpu_custom_call.1} parent=31 // pred_fallthru
          _
        %s183 = sand.u32 %s29, 1
        %s184 = scalar_lea.sflag [#allocation3], %s183
        %s185 = sand.u32 %s29, 1
        %s186 = smul.addr %s185, 8
        %s187 = scalar_lea.vmem [#allocation2], %s186
        %p188 = pneg %p42
        %p189 = pneg %p39
        %p190 = pneg %p63
        %p191 = pneg %p60
        %p192 = pneg %p84
        %p193 = pneg %p81
        %p194 = pneg %p110
        %p195 = pneg %p107
        %s196 = sand.u32 %s97, 1
        %s197 = scalar_lea.sflag [#allocation4], %s196
        %s198 = sand.u32 %s97, 1
        %s199 = smul.addr %s198, 8
        %s200 = scalar_lea.vmem [#allocation7], %s199
        %v201 = vld [vmem:[%s174] sm:$0xff]
        %s202 = smul.u32 %s21, 8
        %v203 = vlaneseq
        %v204 = vshrl.u32 %v203, 7
        %v205 = vstv %s202
        %v206 = vadd.s32 %v205, %v204
        %vm207 = vcmp.lt.s32.totalorder %v206, 16
        %v208 = vsel %vm207, %v201, 1.0
        %v209 = vld [vmem:[#allocation5] sm:$0xff]
        %v210 = vld [vmem:[#allocation5 + $0x8] sm:$0xff]
        %vm211 = vcmask 130048
        %v213 = vsel %vm211, %v208, 0
        %215 = vmatprep.subr.mxu0 0.0
        %v216 = vand.u32 %v209, 4294901760
        %217 = vmatpush1.msra.mxu0 %v216
        %218 = vmatprep.subr.mxu0 0.0
        %v219 = vand.u32 %v210, 4294901760
        %220 = vmatpush1.msra.mxu0 %v219
        %221 = vmatprep.subr.mxu0 0.0
        %222 = vmatpush1.msra.mxu0 0.0
        %223 = vmatprep.subr.mxu0 0.0
        %224 = vmatpush1.msra.mxu0 0.0
        %225 = vmatprep.subr.mxu0 0.0
        %226 = vmatpush1.msra.mxu0 0.0
        %227 = vmatprep.subr.mxu0 0.0
        %228 = vmatpush1.msra.mxu0 0.0
        %229 = vmatprep.subr.mxu0 0.0
        %230 = vmatpush1.msra.mxu0 0.0
        %231 = vmatprep.subr.mxu0 0.0
        %232 = vmatpush1.msra.mxu0 0.0
        %233 = vmatprep.subr.mxu0 0.0
        %234 = vmatpush1.msra.mxu0 0.0
        %235 = vmatprep.subr.mxu0 0.0
        %236 = vmatpush1.msra.mxu0 0.0
        %237 = vmatprep.subr.mxu0 0.0
        %238 = vmatpush1.msra.mxu0 0.0
        %239 = vmatprep.subr.mxu0 0.0
        %240 = vmatpush1.msra.mxu0 0.0
        %241 = vmatprep.subr.mxu0 0.0
        %242 = vmatpush1.msra.mxu0 0.0
        %243 = vmatprep.subr.mxu0 0.0
        %244 = vmatpush1.msra.mxu0 0.0
        %245 = vmatprep.subr.mxu0 0.0
        %246 = vmatpush1.msra.mxu0 0.0
        %247 = vmatprep.subr.mxu0 0.0
        %248 = vmatpush1.msra.mxu0 0.0
        %249 = vmatprep.subr.mxu0 0.0
        %250 = vmatpush1.msra.mxu0 0.0
        %251 = vmatprep.subr.mxu0 0.0
        %252 = vmatpush1.msra.mxu0 0.0
        %253 = vmatprep.subr.mxu0 0.0
        %254 = vmatpush1.msra.mxu0 0.0
        %255 = vmatprep.subr.mxu0 0.0
        %256 = vmatpush1.msra.mxu0 0.0
        %257 = vmatprep.subr.mxu0 0.0
        %258 = vmatpush1.msra.mxu0 0.0
        %259 = vmatprep.subr.mxu0 0.0
        %260 = vmatpush1.msra.mxu0 0.0
        %261 = vmatprep.subr.mxu0 0.0
        %262 = vmatpush1.msra.mxu0 0.0
        %263 = vmatprep.subr.mxu0 0.0
        %264 = vmatpush1.msra.mxu0 0.0
        %265 = vmatprep.subr.mxu0 0.0
        %266 = vmatpush1.msra.mxu0 0.0
        %267 = vmatprep.subr.mxu0 0.0
        %268 = vmatpush1.msra.mxu0 0.0
        %269 = vmatprep.subr.mxu0 0.0
        %270 = vmatpush1.msra.mxu0 0.0
        %271 = vmatprep.subr.mxu0 0.0
        %272 = vmatpush1.msra.mxu0 0.0
        %273 = vmatprep.subr.mxu0 0.0
        %274 = vmatpush1.msra.mxu0 0.0
        %275 = vmatprep.subr.mxu0 0.0
        %276 = vmatpush1.msra.mxu0 0.0
        %277 = vmatprep.subr.mxu0 0.0
        %278 = vmatpush1.msra.mxu0 0.0
        %279 = vmatprep.subr.mxu0 0.0
        %280 = vmatpush1.msra.mxu0 0.0
        %281 = vmatprep.mubr.f32.mxu0 0.0
        %v282 = vand.u32 %v213, 4294901760
        %v283 = vsub.f32 %v213, %v282
        %v284 = vand.u32 %v283, 4294901760
        %v285 = vsub.f32 %v283, %v284
        %v286 = vand.u32 %v285, 4294901760
        %287 = vmatmul.mubr.f32.gmra.mrb[0].mxu0 %v286
        %v288 = vpop.f32.mrb[0].mxu0
        %v289 = vadd.f32 0.0, %v288
        %v290 = vpop.f32.mrb[0].mxu0
        %291 = vdwg.mxu0
        %292 = vmatprep.subr.mxu0 0.0
        %v293 = vand.u32 %v209, 4294901760
        %v294 = vsub.f32 %v209, %v293
        %v295 = vand.u32 %v294, 4294901760
        %v296 = vsub.f32 %v294, %v295
        %v297 = vand.u32 %v296, 4294901760
        %298 = vmatpush1.msra.mxu0 %v297
        %299 = vmatprep.subr.mxu0 0.0
        %v300 = vand.u32 %v210, 4294901760
        %v301 = vsub.f32 %v210, %v300
        %v302 = vand.u32 %v301, 4294901760
        %v303 = vsub.f32 %v301, %v302
        %v304 = vand.u32 %v303, 4294901760
        %305 = vmatpush1.msra.mxu0 %v304
        %306 = vmatprep.subr.mxu0 0.0
        %307 = vmatpush1.msra.mxu0 0.0
        %308 = vmatprep.subr.mxu0 0.0
        %309 = vmatpush1.msra.mxu0 0.0
        %310 = vmatprep.subr.mxu0 0.0
        %311 = vmatpush1.msra.mxu0 0.0
        %312 = vmatprep.subr.mxu0 0.0
        %313 = vmatpush1.msra.mxu0 0.0
        %314 = vmatprep.subr.mxu0 0.0
        %315 = vmatpush1.msra.mxu0 0.0
        %316 = vmatprep.subr.mxu0 0.0
        %317 = vmatpush1.msra.mxu0 0.0
        %318 = vmatprep.subr.mxu0 0.0
        %319 = vmatpush1.msra.mxu0 0.0
        %320 = vmatprep.subr.mxu0 0.0
        %321 = vmatpush1.msra.mxu0 0.0
        %322 = vmatprep.subr.mxu0 0.0
        %323 = vmatpush1.msra.mxu0 0.0
        %324 = vmatprep.subr.mxu0 0.0
        %325 = vmatpush1.msra.mxu0 0.0
        %326 = vmatprep.subr.mxu0 0.0
        %327 = vmatpush1.msra.mxu0 0.0
        %328 = vmatprep.subr.mxu0 0.0
        %329 = vmatpush1.msra.mxu0 0.0
        %330 = vmatprep.subr.mxu0 0.0
        %331 = vmatpush1.msra.mxu0 0.0
        %332 = vmatprep.subr.mxu0 0.0
        %333 = vmatpush1.msra.mxu0 0.0
        %334 = vmatprep.subr.mxu0 0.0
        %335 = vmatpush1.msra.mxu0 0.0
        %336 = vmatprep.subr.mxu0 0.0
        %337 = vmatpush1.msra.mxu0 0.0
        %338 = vmatprep.subr.mxu0 0.0
        %339 = vmatpush1.msra.mxu0 0.0
        %340 = vmatprep.subr.mxu0 0.0
        %341 = vmatpush1.msra.mxu0 0.0
        %342 = vmatprep.subr.mxu0 0.0
        %343 = vmatpush1.msra.mxu0 0.0
        %344 = vmatprep.subr.mxu0 0.0
        %345 = vmatpush1.msra.mxu0 0.0
        %346 = vmatprep.subr.mxu0 0.0
        %347 = vmatpush1.msra.mxu0 0.0
        %348 = vmatprep.subr.mxu0 0.0
        %349 = vmatpush1.msra.mxu0 0.0
        %350 = vmatprep.subr.mxu0 0.0
        %351 = vmatpush1.msra.mxu0 0.0
        %352 = vmatprep.subr.mxu0 0.0
        %353 = vmatpush1.msra.mxu0 0.0
        %354 = vmatprep.subr.mxu0 0.0
        %355 = vmatpush1.msra.mxu0 0.0
        %356 = vmatprep.subr.mxu0 0.0
        %357 = vmatpush1.msra.mxu0 0.0
        %358 = vmatprep.subr.mxu0 0.0
        %359 = vmatpush1.msra.mxu0 0.0
        %360 = vmatprep.subr.mxu0 0.0
        %361 = vmatpush1.msra.mxu0 0.0
        %362 = vmatprep.subr.mxu0 0.0
        %363 = vmatpush1.msra.mxu0 0.0
        %364 = vmatprep.subr.mxu0 0.0
        %365 = vmatpush1.msra.mxu0 0.0
        %366 = vmatprep.mubr.f32.mxu0 0.0
        %v367 = vand.u32 %v213, 4294901760
        %368 = vmatmul.mubr.f32.gmra.mrb[0].mxu0 %v367
        %v369 = vpop.f32.mrb[0].mxu0
        %v370 = vadd.f32 %v289, %v369
        %v371 = vpop.f32.mrb[0].mxu0
        %372 = vdwg.mxu0
        %373 = vmatprep.subr.mxu0 0.0
        %v374 = vand.u32 %v209, 4294901760
        %v375 = vsub.f32 %v209, %v374
        %376 = vmatpush1.msra.mxu0 %v375
        %377 = vmatprep.subr.mxu0 0.0
        %v378 = vand.u32 %v210, 4294901760
        %v379 = vsub.f32 %v210, %v378
        %380 = vmatpush1.msra.mxu0 %v379
        %381 = vmatprep.subr.mxu0 0.0
        %382 = vmatpush1.msra.mxu0 0.0
        %383 = vmatprep.subr.mxu0 0.0
        %384 = vmatpush1.msra.mxu0 0.0
        %385 = vmatprep.subr.mxu0 0.0
        %386 = vmatpush1.msra.mxu0 0.0
        %387 = vmatprep.subr.mxu0 0.0
        %388 = vmatpush1.msra.mxu0 0.0
        %389 = vmatprep.subr.mxu0 0.0
        %390 = vmatpush1.msra.mxu0 0.0
        %391 = vmatprep.subr.mxu0 0.0
        %392 = vmatpush1.msra.mxu0 0.0
        %393 = vmatprep.subr.mxu0 0.0
        %394 = vmatpush1.msra.mxu0 0.0
        %395 = vmatprep.subr.mxu0 0.0
        %396 = vmatpush1.msra.mxu0 0.0
        %397 = vmatprep.subr.mxu0 0.0
        %398 = vmatpush1.msra.mxu0 0.0
        %399 = vmatprep.subr.mxu0 0.0
        %400 = vmatpush1.msra.mxu0 0.0
        %401 = vmatprep.subr.mxu0 0.0
        %402 = vmatpush1.msra.mxu0 0.0
        %403 = vmatprep.subr.mxu0 0.0
        %404 = vmatpush1.msra.mxu0 0.0
        %405 = vmatprep.subr.mxu0 0.0
        %406 = vmatpush1.msra.mxu0 0.0
        %407 = vmatprep.subr.mxu0 0.0
        %408 = vmatpush1.msra.mxu0 0.0
        %409 = vmatprep.subr.mxu0 0.0
        %410 = vmatpush1.msra.mxu0 0.0
        %411 = vmatprep.subr.mxu0 0.0
        %412 = vmatpush1.msra.mxu0 0.0
        %413 = vmatprep.subr.mxu0 0.0
        %414 = vmatpush1.msra.mxu0 0.0
        %415 = vmatprep.subr.mxu0 0.0
        %416 = vmatpush1.msra.mxu0 0.0
        %417 = vmatprep.subr.mxu0 0.0
        %418 = vmatpush1.msra.mxu0 0.0
        %419 = vmatprep.subr.mxu0 0.0
        %420 = vmatpush1.msra.mxu0 0.0
        %421 = vmatprep.subr.mxu0 0.0
        %422 = vmatpush1.msra.mxu0 0.0
        %423 = vmatprep.subr.mxu0 0.0
        %424 = vmatpush1.msra.mxu0 0.0
        %425 = vmatprep.subr.mxu0 0.0
        %426 = vmatpush1.msra.mxu0 0.0
        %427 = vmatprep.subr.mxu0 0.0
        %428 = vmatpush1.msra.mxu0 0.0
        %429 = vmatprep.subr.mxu0 0.0
        %430 = vmatpush1.msra.mxu0 0.0
        %431 = vmatprep.subr.mxu0 0.0
        %432 = vmatpush1.msra.mxu0 0.0
        %433 = vmatprep.subr.mxu0 0.0
        %434 = vmatpush1.msra.mxu0 0.0
        %435 = vmatprep.subr.mxu0 0.0
        %436 = vmatpush1.msra.mxu0 0.0
        %437 = vmatprep.subr.mxu0 0.0
        %438 = vmatpush1.msra.mxu0 0.0
        %439 = vmatprep.subr.mxu0 0.0
        %440 = vmatpush1.msra.mxu0 0.0
        %441 = vmatprep.mubr.f32.mxu0 0.0
        %v442 = vand.u32 %v213, 4294901760
        %v443 = vsub.f32 %v213, %v442
        %444 = vmatmul.mubr.f32.gmra.mrb[0].mxu0 %v443
        %v445 = vpop.f32.mrb[0].mxu0
        %v446 = vadd.f32 %v370, %v445
        %v447 = vpop.f32.mrb[0].mxu0
        %448 = vdwg.mxu0
        %449 = vmatprep.subr.mxu0 0.0
        %v450 = vand.u32 %v209, 4294901760
        %451 = vmatpush1.msra.mxu0 %v450
        %452 = vmatprep.subr.mxu0 0.0
        %v453 = vand.u32 %v210, 4294901760
        %454 = vmatpush1.msra.mxu0 %v453
        %455 = vmatprep.subr.mxu0 0.0
        %456 = vmatpush1.msra.mxu0 0.0
        %457 = vmatprep.subr.mxu0 0.0
        %458 = vmatpush1.msra.mxu0 0.0
        %459 = vmatprep.subr.mxu0 0.0
        %460 = vmatpush1.msra.mxu0 0.0
        %461 = vmatprep.subr.mxu0 0.0
        %462 = vmatpush1.msra.mxu0 0.0
        %463 = vmatprep.subr.mxu0 0.0
        %464 = vmatpush1.msra.mxu0 0.0
        %465 = vmatprep.subr.mxu0 0.0
        %466 = vmatpush1.msra.mxu0 0.0
        %467 = vmatprep.subr.mxu0 0.0
        %468 = vmatpush1.msra.mxu0 0.0
        %469 = vmatprep.subr.mxu0 0.0
        %470 = vmatpush1.msra.mxu0 0.0
        %471 = vmatprep.subr.mxu0 0.0
        %472 = vmatpush1.msra.mxu0 0.0
        %473 = vmatprep.subr.mxu0 0.0
        %474 = vmatpush1.msra.mxu0 0.0
        %475 = vmatprep.subr.mxu0 0.0
        %476 = vmatpush1.msra.mxu0 0.0
        %477 = vmatprep.subr.mxu0 0.0
        %478 = vmatpush1.msra.mxu0 0.0
        %479 = vmatprep.subr.mxu0 0.0
        %480 = vmatpush1.msra.mxu0 0.0
        %481 = vmatprep.subr.mxu0 0.0
        %482 = vmatpush1.msra.mxu0 0.0
        %483 = vmatprep.subr.mxu0 0.0
        %484 = vmatpush1.msra.mxu0 0.0
        %485 = vmatprep.subr.mxu0 0.0
        %486 = vmatpush1.msra.mxu0 0.0
        %487 = vmatprep.subr.mxu0 0.0
        %488 = vmatpush1.msra.mxu0 0.0
        %489 = vmatprep.subr.mxu0 0.0
        %490 = vmatpush1.msra.mxu0 0.0
        %491 = vmatprep.subr.mxu0 0.0
        %492 = vmatpush1.msra.mxu0 0.0
        %493 = vmatprep.subr.mxu0 0.0
        %494 = vmatpush1.msra.mxu0 0.0
        %495 = vmatprep.subr.mxu0 0.0
        %496 = vmatpush1.msra.mxu0 0.0
        %497 = vmatprep.subr.mxu0 0.0
        %498 = vmatpush1.msra.mxu0 0.0
        %499 = vmatprep.subr.mxu0 0.0
        %500 = vmatpush1.msra.mxu0 0.0
        %501 = vmatprep.subr.mxu0 0.0
        %502 = vmatpush1.msra.mxu0 0.0
        %503 = vmatprep.subr.mxu0 0.0
        %504 = vmatpush1.msra.mxu0 0.0
        %505 = vmatprep.subr.mxu0 0.0
        %506 = vmatpush1.msra.mxu0 0.0
        %507 = vmatprep.subr.mxu0 0.0
        %508 = vmatpush1.msra.mxu0 0.0
        %509 = vmatprep.subr.mxu0 0.0
        %510 = vmatpush1.msra.mxu0 0.0
        %511 = vmatprep.subr.mxu0 0.0
        %512 = vmatpush1.msra.mxu0 0.0
        %513 = vmatprep.subr.mxu0 0.0
        %514 = vmatpush1.msra.mxu0 0.0
        %515 = vmatprep.mubr.f32.mxu0 0.0
        %v516 = vand.u32 %v213, 4294901760
        %v517 = vsub.f32 %v213, %v516
        %v518 = vand.u32 %v517, 4294901760
        %519 = vmatmul.mubr.f32.gmra.mrb[0].mxu0 %v518
        %v520 = vpop.f32.mrb[0].mxu0
        %v521 = vadd.f32 %v446, %v520
        %v522 = vpop.f32.mrb[0].mxu0
        %523 = vdwg.mxu0
        %524 = vmatprep.subr.mxu0 0.0
        %v525 = vand.u32 %v209, 4294901760
        %v526 = vsub.f32 %v209, %v525
        %v527 = vand.u32 %v526, 4294901760
        %528 = vmatpush1.msra.mxu0 %v527
        %529 = vmatprep.subr.mxu0 0.0
        %v530 = vand.u32 %v210, 4294901760
        %v531 = vsub.f32 %v210, %v530
        %v532 = vand.u32 %v531, 4294901760
        %533 = vmatpush1.msra.mxu0 %v532
        %534 = vmatprep.subr.mxu0 0.0
        %535 = vmatpush1.msra.mxu0 0.0
        %536 = vmatprep.subr.mxu0 0.0
        %537 = vmatpush1.msra.mxu0 0.0
        %538 = vmatprep.subr.mxu0 0.0
        %539 = vmatpush1.msra.mxu0 0.0
        %540 = vmatprep.subr.mxu0 0.0
        %541 = vmatpush1.msra.mxu0 0.0
        %542 = vmatprep.subr.mxu0 0.0
        %543 = vmatpush1.msra.mxu0 0.0
        %544 = vmatprep.subr.mxu0 0.0
        %545 = vmatpush1.msra.mxu0 0.0
        %546 = vmatprep.subr.mxu0 0.0
        %547 = vmatpush1.msra.mxu0 0.0
        %548 = vmatprep.subr.mxu0 0.0
        %549 = vmatpush1.msra.mxu0 0.0
        %550 = vmatprep.subr.mxu0 0.0
        %551 = vmatpush1.msra.mxu0 0.0
        %552 = vmatprep.subr.mxu0 0.0
        %553 = vmatpush1.msra.mxu0 0.0
        %554 = vmatprep.subr.mxu0 0.0
        %555 = vmatpush1.msra.mxu0 0.0
        %556 = vmatprep.subr.mxu0 0.0
        %557 = vmatpush1.msra.mxu0 0.0
        %558 = vmatprep.subr.mxu0 0.0
        %559 = vmatpush1.msra.mxu0 0.0
        %560 = vmatprep.subr.mxu0 0.0
        %561 = vmatpush1.msra.mxu0 0.0
        %562 = vmatprep.subr.mxu0 0.0
        %563 = vmatpush1.msra.mxu0 0.0
        %564 = vmatprep.subr.mxu0 0.0
        %565 = vmatpush1.msra.mxu0 0.0
        %566 = vmatprep.subr.mxu0 0.0
        %567 = vmatpush1.msra.mxu0 0.0
        %568 = vmatprep.subr.mxu0 0.0
        %569 = vmatpush1.msra.mxu0 0.0
        %570 = vmatprep.subr.mxu0 0.0
        %571 = vmatpush1.msra.mxu0 0.0
        %572 = vmatprep.subr.mxu0 0.0
        %573 = vmatpush1.msra.mxu0 0.0
        %574 = vmatprep.subr.mxu0 0.0
        %575 = vmatpush1.msra.mxu0 0.0
        %576 = vmatprep.subr.mxu0 0.0
        %577 = vmatpush1.msra.mxu0 0.0
        %578 = vmatprep.subr.mxu0 0.0
        %579 = vmatpush1.msra.mxu0 0.0
        %580 = vmatprep.subr.mxu0 0.0
        %581 = vmatpush1.msra.mxu0 0.0
        %582 = vmatprep.subr.mxu0 0.0
        %583 = vmatpush1.msra.mxu0 0.0
        %584 = vmatprep.subr.mxu0 0.0
        %585 = vmatpush1.msra.mxu0 0.0
        %586 = vmatprep.subr.mxu0 0.0
        %587 = vmatpush1.msra.mxu0 0.0
        %588 = vmatprep.subr.mxu0 0.0
        %589 = vmatpush1.msra.mxu0 0.0
        %590 = vmatprep.subr.mxu0 0.0
        %591 = vmatpush1.msra.mxu0 0.0
        %592 = vmatprep.subr.mxu0 0.0
        %593 = vmatpush1.msra.mxu0 0.0
        %594 = vmatprep.mubr.f32.mxu0 0.0
        %v595 = vand.u32 %v213, 4294901760
        %596 = vmatmul.mubr.f32.gmra.mrb[0].mxu0 %v595
        %v597 = vpop.f32.mrb[0].mxu0
        %v598 = vadd.f32 %v521, %v597
        %v599 = vpop.f32.mrb[0].mxu0
        %600 = vdwg.mxu0
        %601 = vmatprep.subr.mxu0 0.0
        %v602 = vand.u32 %v209, 4294901760
        %603 = vmatpush1.msra.mxu0 %v602
        %604 = vmatprep.subr.mxu0 0.0
        %v605 = vand.u32 %v210, 4294901760
        %606 = vmatpush1.msra.mxu0 %v605
        %607 = vmatprep.subr.mxu0 0.0
        %608 = vmatpush1.msra.mxu0 0.0
        %609 = vmatprep.subr.mxu0 0.0
        %610 = vmatpush1.msra.mxu0 0.0
        %611 = vmatprep.subr.mxu0 0.0
        %612 = vmatpush1.msra.mxu0 0.0
        %613 = vmatprep.subr.mxu0 0.0
        %614 = vmatpush1.msra.mxu0 0.0
        %615 = vmatprep.subr.mxu0 0.0
        %616 = vmatpush1.msra.mxu0 0.0
        %617 = vmatprep.subr.mxu0 0.0
        %618 = vmatpush1.msra.mxu0 0.0
        %619 = vmatprep.subr.mxu0 0.0
        %620 = vmatpush1.msra.mxu0 0.0
        %621 = vmatprep.subr.mxu0 0.0
        %622 = vmatpush1.msra.mxu0 0.0
        %623 = vmatprep.subr.mxu0 0.0
        %624 = vmatpush1.msra.mxu0 0.0
        %625 = vmatprep.subr.mxu0 0.0
        %626 = vmatpush1.msra.mxu0 0.0
        %627 = vmatprep.subr.mxu0 0.0
        %628 = vmatpush1.msra.mxu0 0.0
        %629 = vmatprep.subr.mxu0 0.0
        %630 = vmatpush1.msra.mxu0 0.0
        %631 = vmatprep.subr.mxu0 0.0
        %632 = vmatpush1.msra.mxu0 0.0
        %633 = vmatprep.subr.mxu0 0.0
        %634 = vmatpush1.msra.mxu0 0.0
        %635 = vmatprep.subr.mxu0 0.0
        %636 = vmatpush1.msra.mxu0 0.0
        %637 = vmatprep.subr.mxu0 0.0
        %638 = vmatpush1.msra.mxu0 0.0
        %639 = vmatprep.subr.mxu0 0.0
        %640 = vmatpush1.msra.mxu0 0.0
        %641 = vmatprep.subr.mxu0 0.0
        %642 = vmatpush1.msra.mxu0 0.0
        %643 = vmatprep.subr.mxu0 0.0
        %644 = vmatpush1.msra.mxu0 0.0
        %645 = vmatprep.subr.mxu0 0.0
        %646 = vmatpush1.msra.mxu0 0.0
        %647 = vmatprep.subr.mxu0 0.0
        %648 = vmatpush1.msra.mxu0 0.0
        %649 = vmatprep.subr.mxu0 0.0
        %650 = vmatpush1.msra.mxu0 0.0
        %651 = vmatprep.subr.mxu0 0.0
        %652 = vmatpush1.msra.mxu0 0.0
        %653 = vmatprep.subr.mxu0 0.0
        %654 = vmatpush1.msra.mxu0 0.0
        %655 = vmatprep.subr.mxu0 0.0
        %656 = vmatpush1.msra.mxu0 0.0
        %657 = vmatprep.subr.mxu0 0.0
        %658 = vmatpush1.msra.mxu0 0.0
        %659 = vmatprep.subr.mxu0 0.0
        %660 = vmatpush1.msra.mxu0 0.0
        %661 = vmatprep.subr.mxu0 0.0
        %662 = vmatpush1.msra.mxu0 0.0
        %663 = vmatprep.subr.mxu0 0.0
        %664 = vmatpush1.msra.mxu0 0.0
        %665 = vmatprep.subr.mxu0 0.0
        %666 = vmatpush1.msra.mxu0 0.0
        %667 = vmatprep.mubr.f32.mxu0 0.0
        %v668 = vand.u32 %v213, 4294901760
        %669 = vmatmul.mubr.f32.gmra.mrb[0].mxu0 %v668
        %v670 = vpop.f32.mrb[0].mxu0
        %v671 = vadd.f32 %v598, %v670
        %v672 = vpop.f32.mrb[0].mxu0
        %673 = vdwg.mxu0
        %v674 = vld [vmem:[%s2] sm:$0x1]
        %v676 = vlaneseq
        %v677 = vshrl.u32 %v676, 7
        %v678 = vsub.s32 0, %v677
        %v679 = vrot.slane %v674, %v678
        %v681 = vmul.f32 %v679, %v671
        %v682 = vrcp.pop %v671
        %v683 = vmul.f32 0.096225046, %v682
        %v684 = vand.u32 2147483647, %v681
        %vm685 = vcmp.le.f32.partialorder %v684, 0.7853982
        %vm686 = vcmp.lt.s32.totalorder %v681, 0
        %v687 = vand.u32 %v681, 2139095040
        %v688 = vshrl.u32 %v687, 23
        %v689 = vsub.s32 %v688, 127
        %v690 = vand.u32 2147483647, %v681
        %v691 = vand.u32 %v690, 8388607
        %v692 = vor.u32 %v691, 8388608
        %v693 = vsub.s32 0, %v692
        %v694 = vadd.s32 %v689, 1
        %vm695 = vcmp.gt.s32.totalorder %v694, 0
        %v696 = vsel %vm695, %v694, 0
        %v697 = vshrl.u32 %v696, 5
        %v698 = vand.u32 %v696, 31
        %v699 = vsub.s32 32, %v698
        %v700 = vshrl.u32 683565275, %v699
        %v701 = vshll.u32 683565275, %v698
        %v702 = vshrl.u32 2475754826, %v699
        %v703 = vor.u32 %v701, %v702
        %v704 = vshll.u32 2475754826, %v698
        %v705 = vshrl.u32 2131351028, %v699
        %v706 = vor.u32 %v704, %v705
        %v707 = vshll.u32 2131351028, %v698
        %v708 = vshrl.u32 2102212464, %v699
        %v709 = vor.u32 %v707, %v708
        %v710 = vshll.u32 2102212464, %v698
        %v711 = vshrl.u32 920167782, %v699
        %v712 = vor.u32 %v710, %v711
        %v713 = vshll.u32 920167782, %v698
        %v714 = vshrl.u32 1326507024, %v699
        %v715 = vor.u32 %v713, %v714
        %vm716 = vcmp.lt.s32.totalorder %v697, 1
        %vm717 = vcmp.lt.s32.totalorder %v697, 2
        %vm718 = vcmp.lt.s32.totalorder %v697, 3
        %vm719 = vcmp.lt.s32.totalorder %v697, 4
        %v720 = vsel %vm716, %v700, %v703
        %v721 = vsel %vm719, %v709, 2102212464
        %v722 = vsel %vm718, %v706, %v721
        %v723 = vsel %vm717, %v720, %v722
        %v724 = vsel %vm716, %v703, %v706
        %v725 = vsel %vm719, %v712, 920167782
        %v726 = vsel %vm718, %v709, %v725
        %v727 = vsel %vm717, %v724, %v726
        %v728 = vsel %vm716, %v706, %v709
        %v729 = vsel %vm719, %v715, 1326507024
        %v730 = vsel %vm718, %v712, %v729
        %v731 = vsel %vm717, %v728, %v730
        %v732 = vshll.u32 %v692, 8
        %v733 = vmul.u32.u64.compose %v732, %v731
        %v734 = vextract.low.u32 %v733
        %v735 = vextract.high.u32 %v733
        %v736 = vmul.u32.u64.compose %v732, %v727
        %v737 = vextract.low.u32 %v736
        %v738 = vextract.high.u32 %v736
        %v739 = vmul.u32 %v732, %v723
        %v740 = vadd.s32 %v735, %v737
        %vm741 = vc.u32 %v735, %v737
        %v742 = vadd.s32 %v738, 1
        %v743 = vsel %vm741, %v742, %v738
        %v744 = vadd.s32 %v739, %v743
        %v745 = vadd.s32 %v744, 536870912
        %v746 = vshrl.u32 %v745, 30
        %v747 = vshll.u32 %v746, 30
        %v748 = vsub.s32 %v744, %v747
        %vm749 = vcmp.lt.s32.totalorder %v748, 0
        %v750 = vsub.s32 0, %v748
        %v751 = vsel %vm749, %v750, %v748
        %v752 = vclz %v751
        %v753 = vsub.s32 %v752, 2
        %vm754 = vcmp.gt.s32.totalorder 0, %v753
        %v755 = vsel %vm754, 0, %v753
        %v756 = vsub.s32 32, %v755
        %v757 = vshll.u32 %v748, %v755
        %v758 = vshrl.u32 %v740, %v756
        %v759 = vor.u32 %v757, %v758
        %v760 = vsub.s32 4294967266, %v755
        %v761 = vadd.s32 %v760, 127
        %v762 = vshll.u32 %v761, 23
        %v763 = vor.u32 4788187, %v762
        %v764 = vand.u32 2147483647, %v763
        %v766 = vcvt.s32.f32 %v759
        %v767 = vmul.f32 %v766, %v764
        %v768 = vxor.u32 %v767, 2147483648
        %v769 = vsel %vm686, %v768, %v767
        %v770 = vsub.s32 4, %v746
        %v771 = vsel %vm686, %v770, %v746
        %v772 = vsel %vm685, %v681, %v769
        %v773 = vsel %vm685, 0, %v771
        %v774 = vcosq.f32.pop %v772
        %v775 = vsinq.f32.pop %v772
        %vm776 = vweird.f32 %v681
        %v777 = vadd.s32 %v773, 3
        %v778 = vand.u32 %v777, 3
        %vm779 = vcmp.lt.s32.totalorder %v778, 2
        %vm780 = vcmp.eq.s32.totalorder %v778, 0
        %v781 = vxor.u32 %v775, 2147483648
        %v782 = vsel %vm780, %v774, %v781
        %vm783 = vcmp.eq.s32.totalorder %v778, 2
        %v784 = vxor.u32 %v774, 2147483648
        %v785 = vsel %vm783, %v784, %v775
        %v786 = vsel %vm779, %v782, %v785
        %v787 = vsel %vm776, nan, %v786
        %v788 = vmul.f32 %v683, %v787
        %789 = vst [vmem:[%s200] sm:$0xff] %v788
        %s790 = sand.u32 %s97, 1
        %s791 = scalar_lea.sflag [#allocation4], %s790
        %s792 = sand.u32 %s97, 1
        %s793 = smul.addr %s792, 8
        %s794 = scalar_lea.vmem [#allocation7], %s793
        // Predicated region
        $region41: #{tpu_custom_call.1} parent=31 // pred_check
          %p795 = pneg %p107
        $region42: #{tpu_custom_call.1} parent=31 // pred_check_branch
          %797 = sbr.rel (%p795) target = $region44
        $region43: #{tpu_custom_call.1} parent=31 // pred_region
          %s799 = ssub.s32 128, 128
          %800 = vsyncadd %s791, %s799
          %s801 = smul.addr %s21, 128
          %s802 = scalar_lea.hbm %s3, %s801
          %s804 = sshll.u32 %s794, 4
          %s805 = int_to_ptr.vmem [resolvable:$true] %s804
          %807 = dma.vmem_to_hbm [thread:$0]  %s805, 128, %s802, %s791
        $region44: #{tpu_custom_call.1} parent=31 // pred_fallthru
          _
      $region32: #{tpu_custom_call.1} parent=5 // pred_fallthru
        _
      %p808 = scmp.le.s32.totalorder 2, %s16
      // Predicated region
      $region45: #{tpu_custom_call.1} parent=5 // pred_check
        %p809 = pneg %p808
      $region46: #{tpu_custom_call.1} parent=5 // pred_check_branch
        %811 = sbr.rel (%p809) target = $region48
      $region47: #{tpu_custom_call.1} parent=5 // pred_region
        %s812 = ssub.s32 %s16, 2
        // Predicated region
        $region49: #{tpu_custom_call.1} parent=47 // pred_check
          %p813 = pneg %p113
        $region50: #{tpu_custom_call.1} parent=47 // pred_check_branch
          %815 = sbr.rel (%p813) target = $region52
        $region51: #{tpu_custom_call.1} parent=47 // pred_region
          %s816 = sand.u32 %s98, 1
          %s817 = scalar_lea.sflag [#allocation4], %s816
          %s818 = sand.u32 %s98, 1
          %s819 = smul.addr %s818, 8
          %s820 = scalar_lea.vmem [#allocation7], %s819
          %821 = dma.done %s817, 128
        $region52: #{tpu_custom_call.1} parent=47 // pred_fallthru
          _
      $region48: #{tpu_custom_call.1} parent=5 // pred_fallthru
        _
    $region6: #{tpu_custom_call.1} parent=1 // loop_footer
      %s20 = sadd.s32 1, %s16
    $region7: #{tpu_custom_call.1} parent=1 // loop_footer_branch
      %15 = sbr.rel target = $region3
    $region8: #{tpu_custom_call.1} parent=1 // loop_exit
      _
    %822 = vsyncpa [#allocation3], 1
    %s823 = scalar_lea.sflag [#allocation3], 1
    %824 = vsyncpa %s823, 1
    %825 = vsyncpa [#allocation6], 1
    %826 = vsyncpa [#allocation4], 1
    %s827 = scalar_lea.sflag [#allocation4], 1
    %828 = vsyncpa %s827, 1

</llo_original>
